<compile_context>
chip_gen: v5e
topology: v5e:2x2
jax: 0.10.0
libtpu: 0.0.40
codegen_flags: <defaults>
</compile_context>

<pallas_src>
import jax
import jax.numpy as jnp
from jax.experimental import pallas as pl
from jax.experimental.pallas import tpu as pltpu


def _split_channels_kernel(x_ref, bb_ref, sc_ref):
    """Per (batch, N-tile) block: x (1, C, TN) -> bboxes (1, 4, TN), scores (1, nc, TN).

    Outputs stay channel-major: N is the last (128-lane) axis, so every store
    is a full-width vst (no masked partial stores) and no transpose is needed.
    """
    x = x_ref[0]                     # (C, TN)
    bb_ref[0] = x[0:4, :]            # (4,  TN)  -> x, y, w, h  (channel-major)
    # Sublane slice starting at offset 4 costs one cheap XLU sublane rotate per
    # tile — free filler while the kernel is DMA-bound (do not pad C for this).
    sc_ref[0] = x[4:, :]             # (nc, TN)  -> class confidences


def _round_up(v, m):
    return ((v + m - 1) // m) * m


def _plan_n(n, cap=8192, min_tiles=2, overhead_lanes=1024):
    """Pick (n_pad, tn) for the lane (N) axis.

    tn is a multiple of 128 <= cap; n_pad is the smallest multiple of tn >= n.
    Candidates are scored with a tiny cost model: padded traffic (proportional
    to n_pad) plus a per-grid-step overhead (~0.35 us, modeled as ~1024 lanes
    of copy traffic), so realistic YOLO N (e.g. 25200) gets multi-K-lane tiles
    instead of degenerating to 128-lane tiles or one huge VMEM-busting block.
    Whenever N >= 256 at least `min_tiles` N tiles are kept so v7x's two
    TensorCores can split the work even at batch=1.
    """
    n128 = _round_up(n, 128)
    cap = max(128, (cap // 128) * 128)
    if n128 >= min_tiles * 128:
        cap = min(cap, max(128, _round_up(n128 // min_tiles, 128)))
    best = None                       # (cost, n_pad, tn)
    tn = cap
    while tn >= 128:
        n_pad = _round_up(n128, tn)
        cost = n_pad + (n_pad // tn) * overhead_lanes
        if best is None or cost < best[0] or (cost == best[0] and tn > best[2]):
            best = (cost, n_pad, tn)
        tn -= 128
    return best[1], best[2]


def onnx_trt_preprocess(x, n_classes, n_tile_cap=8192):
    """Pallas-computed part of ONNX_TRT.forward (hot path).

    Returns CHANNEL-MAJOR bboxes_cm (B, 4, N) and scores_cm (B, nc, N): the box
    axis N stays on the 128-lane axis, so the kernel does pure lane-dense copies
    (no transpose, no masked stores).  Use to_api_layout() only if the
    PyTorch-facing (B, N, 1, 4)/(B, N, nc) layout is truly required.
    """
    B, C, N = x.shape
    assert C == 4 + n_classes
    n_pad, tn = _plan_n(N, n_tile_cap)
    if n_pad != N:
        # Pad the box axis so large lane tiles survive non-128-multiple N
        # (keeps live buffers far below v7x's 64 MiB VMEM); sliced off below.
        x = jnp.pad(x, ((0, 0), (0, 0), (0, n_pad - N)))
    grid = (B, n_pad // tn)
    itemsize = jnp.dtype(x.dtype).itemsize

    bboxes_cm, scores_cm = pl.pallas_call(
        _split_channels_kernel,
        out_shape=(
            jax.ShapeDtypeStruct((B, 4, n_pad), x.dtype),
            jax.ShapeDtypeStruct((B, n_classes, n_pad), x.dtype),
        ),
        grid=grid,
        in_specs=[pl.BlockSpec((1, C, tn), lambda b, n: (b, 0, n))],
        out_specs=(
            pl.BlockSpec((1, 4, tn), lambda b, n: (b, 0, n)),
            pl.BlockSpec((1, n_classes, tn), lambda b, n: (b, 0, n)),
        ),
        compiler_params=pltpu.CompilerParams(
            # Both axes independent: v7x's two TensorCores split the
            # (B, N-tiles) grid; _plan_n keeps >= 2 N tiles even at batch=1.
            dimension_semantics=("parallel", "parallel")),
        cost_estimate=pl.CostEstimate(
            flops=0, transcendentals=0,
            bytes_accessed=2 * B * C * n_pad * itemsize),
    )(x)

    if n_pad != N:
        bboxes_cm = bboxes_cm[..., :N]
        scores_cm = scores_cm[..., :N]
    return bboxes_cm, scores_cm


def to_api_layout(bboxes_cm, scores_cm):
    """Optional layout plumbing to the PyTorch-facing shapes (NOT the hot path).

    A real consumer should take the channel-major kernel outputs directly; this
    XLA transpose exists only for API parity / verification.
    """
    bboxes = jnp.transpose(bboxes_cm, (0, 2, 1))[:, :, None, :]   # (B, N, 1, 4)
    scores = jnp.transpose(scores_cm, (0, 2, 1))                  # (B, N, nc)
    return bboxes, scores


def trt_nms_stub(key, batch_size, n_classes, max_output_boxes):
    """Reproduces TRT_NMS.forward (a random placeholder for the TRT plugin)."""
    # TODO(synk): TRT::EfficientNMS_TRT has no Pallas equivalent; the PyTorch
    # forward is itself a random stub, so only shapes/dtypes are reproduced.
    k0, k1, k2, k3 = jax.random.split(key, 4)
    num_det = jax.random.randint(
        k0, (batch_size, 1), 0, max_output_boxes, dtype=jnp.int32)
    det_boxes = jax.random.normal(
        k1, (batch_size, max_output_boxes, 4), dtype=jnp.float32)
    det_scores = jax.random.normal(
        k2, (batch_size, max_output_boxes), dtype=jnp.float32)
    det_classes = jax.random.randint(
        k3, (batch_size, max_output_boxes), 0, n_classes, dtype=jnp.int32)
    return num_det, det_boxes, det_scores, det_classes


def onnx_trt_forward(x, key, max_obj=100, n_classes=80):
    """Equivalent of ONNX_TRT.forward.

    The NMS plugin stub only consumes the *shapes* of bboxes/scores (its
    PyTorch forward is a random placeholder), so the channel-major kernel
    outputs feed it directly — no permute pass in the pipeline.
    """
    if isinstance(x, list):
        x = x[1]
    bboxes_cm, scores_cm = onnx_trt_preprocess(x, n_classes)    # Pallas hot path
    batch_size = scores_cm.shape[0]
    num_det, det_boxes, det_scores, det_classes = trt_nms_stub(
        key, batch_size, n_classes, max_obj)
    return (num_det, det_boxes, det_scores, det_classes), (bboxes_cm, scores_cm)


if __name__ == "__main__":
    # Small shapes: batch=2, n_classes=16 (channels = 4 + 16 = 20), 1536 boxes
    # (multiple of 128, large enough to exercise the tiled N grid axis).
    B, NC, N, MAX_OBJ = 2, 16, 1536, 100
    key = jax.random.PRNGKey(0)
    kx, knms = jax.random.split(key)
    x = jax.random.normal(kx, (B, 4 + NC, N), dtype=jnp.float32)

    (num_det, det_boxes, det_scores, det_classes), (bboxes_cm, scores_cm) = \
        onnx_trt_forward(x, knms, max_obj=MAX_OBJ, n_classes=NC)
    for t in (num_det, det_boxes, det_scores, det_classes, bboxes_cm, scores_cm):
        jax.block_until_ready(t)

    # Channel-major kernel outputs vs reference slices of x.
    assert bboxes_cm.shape == (B, 4, N) and scores_cm.shape == (B, NC, N)
    assert jnp.array_equal(bboxes_cm, x[:, 0:4, :])
    assert jnp.array_equal(scores_cm, x[:, 4:, :])

    # Optional PyTorch-facing layout matches the module's permute+split+cat.
    bboxes, scores = to_api_layout(bboxes_cm, scores_cm)
    xt = jnp.transpose(x, (0, 2, 1))
    assert bboxes.shape == (B, N, 1, 4) and scores.shape == (B, N, NC)
    assert jnp.array_equal(bboxes, xt[..., 0:4][:, :, None, :])
    assert jnp.array_equal(scores, xt[..., 4:])

    # NMS-plugin stub outputs: shapes/dtypes match the PyTorch placeholder.
    assert num_det.shape == (B, 1) and num_det.dtype == jnp.int32
    assert det_boxes.shape == (B, MAX_OBJ, 4) and det_boxes.dtype == jnp.float32
    assert det_scores.shape == (B, MAX_OBJ) and det_scores.dtype == jnp.float32
    assert det_classes.shape == (B, MAX_OBJ) and det_classes.dtype == jnp.int32

    # Exercise the padded-N path (N not a multiple of 128) together with bf16
    # I/O (halves HBM traffic of this zero-FLOP, bandwidth-bound op).
    N2 = 1000
    x2 = jax.random.normal(jax.random.PRNGKey(1), (1, 4 + NC, N2),
                           dtype=jnp.float32).astype(jnp.bfloat16)
    bb2, sc2 = onnx_trt_preprocess(x2, NC)
    jax.block_until_ready((bb2, sc2))
    assert bb2.shape == (1, 4, N2) and sc2.shape == (1, NC, N2)
    assert bb2.dtype == jnp.bfloat16 and sc2.dtype == jnp.bfloat16
    assert jnp.array_equal(bb2, x2[:, 0:4, :])
    assert jnp.array_equal(sc2, x2[:, 4:, :])

    print("KERNEL_OK")
</pallas_src>

<mosaic_0001>
module attributes {stable_mosaic.version = 11 : i64} {
  func.func @_split_channels_kernel(%arg0: i32, %arg1: i32, %arg2: memref<1x20x768xf32, #tpu.memory_space<vmem>>, %arg3: memref<1x4x768xf32, #tpu.memory_space<vmem>>, %arg4: memref<1x16x768xf32, #tpu.memory_space<vmem>>) attributes {dimension_semantics = [#tpu.dimension_semantics<parallel>, #tpu.dimension_semantics<parallel>], iteration_bounds = array<i64: 2, 2>, scalar_prefetch = 0 : i64, scratch_operands = 0 : i64, tpu.core_type = #tpu.core_type<tc>, window_params = [{transform_indices = @transform_0, window_bounds = array<i64: 1, 20, 768>}, {transform_indices = @transform_1, window_bounds = array<i64: 1, 4, 768>}, {transform_indices = @transform_2, window_bounds = array<i64: 1, 16, 768>}]} {
    %c0 = arith.constant 0 : index
    %c0_0 = arith.constant 0 : index
    %c0_1 = arith.constant 0 : index
    %0 = vector.load %arg2[%c0, %c0_0, %c0_1] : memref<1x20x768xf32, #tpu.memory_space<vmem>>, vector<1x20x768xf32>
    %1 = vector.shape_cast %0 : vector<1x20x768xf32> to vector<20x768xf32>
    %2 = vector.extract_strided_slice %1 {offsets = [0, 0], sizes = [4, 768], strides = [1, 1]} : vector<20x768xf32> to vector<4x768xf32>
    %c0_2 = arith.constant 0 : index
    %c0_3 = arith.constant 0 : index
    %c0_4 = arith.constant 0 : index
    %3 = vector.load %arg3[%c0_2, %c0_3, %c0_4] : memref<1x4x768xf32, #tpu.memory_space<vmem>>, vector<1x4x768xf32>
    %4 = vector.shape_cast %3 : vector<1x4x768xf32> to vector<4x768xf32>
    %5 = vector.shape_cast %2 : vector<4x768xf32> to vector<1x4x768xf32>
    tpu.vector_store %arg3[%c0_2, %c0_3, %c0_4], %5 {strides = array<i32>} : memref<1x4x768xf32, #tpu.memory_space<vmem>>, vector<1x4x768xf32>,
    %6 = vector.extract_strided_slice %1 {offsets = [4, 0], sizes = [16, 768], strides = [1, 1]} : vector<20x768xf32> to vector<16x768xf32>
    %c0_5 = arith.constant 0 : index
    %c0_6 = arith.constant 0 : index
    %c0_7 = arith.constant 0 : index
    %7 = vector.load %arg4[%c0_5, %c0_6, %c0_7] : memref<1x16x768xf32, #tpu.memory_space<vmem>>, vector<1x16x768xf32>
    %8 = vector.shape_cast %7 : vector<1x16x768xf32> to vector<16x768xf32>
    %9 = vector.shape_cast %6 : vector<16x768xf32> to vector<1x16x768xf32>
    tpu.vector_store %arg4[%c0_5, %c0_6, %c0_7], %9 {strides = array<i32>} : memref<1x16x768xf32, #tpu.memory_space<vmem>>, vector<1x16x768xf32>,
    return
  }
  func.func @transform_0(%arg0: i32, %arg1: i32) -> (i32, i32, i32) {
    %c0_i32 = arith.constant 0 : i32
    %c0_i32_0 = arith.constant 0 : i32
    return %arg0, %c0_i32, %arg1 : i32, i32, i32
  }
  func.func @transform_1(%arg0: i32, %arg1: i32) -> (i32, i32, i32) {
    %c0_i32 = arith.constant 0 : i32
    %c0_i32_0 = arith.constant 0 : i32
    return %arg0, %c0_i32, %arg1 : i32, i32, i32
  }
  func.func @transform_2(%arg0: i32, %arg1: i32) -> (i32, i32, i32) {
    %c0_i32 = arith.constant 0 : i32
    %c0_i32_0 = arith.constant 0 : i32
    return %arg0, %c0_i32, %arg1 : i32, i32, i32
  }
}

</mosaic_0001>

<llo_original>
// kernel: tpu_custom_call.1
$region0: #{tpu_custom_call.1}
  #allocation0 [shape = 'u32[]', space=smem, size = 0x4, offset = 0x4, fixed_abs, tag = 'smem constant byte address 0x4 - core index']
  #allocation1 [shape = 'u32[72,128]{1,0:T(1,128)}', space=vmem, size = 0x9000, scoped, tag = 'internal scratch']
  %s0 = inlined_call_operand.vmem [shape: f32[2,20,1536], index: 0, kind: input, shape index: {}]
  %s1 = inlined_call_operand.hbm [shape: f32[2,4,1536], index: 1, kind: output, shape index: {0}]
  %s2 = inlined_call_operand.hbm [shape: f32[2,16,1536], index: 2, kind: output, shape index: {1}]
  %3 = xla_tuple %s1, %s2
  %s4 = sld [smem:[#allocation0]]
  $region68: #{tpu_custom_call.1} parent=0
    _
  %s6 = ssub.s32 1, %s4
  %s7 = scalar_select 0, %s6, %s4
  $region1: #{tpu_custom_call.1} parent=0
    #allocation2 [shape = 'u8[147456]{0}', space=vmem, size = 0x24000, scoped, tag = 'input window, operand 0']
    #allocation3 [shape = 'u8[24576]{0}', space=vmem, size = 0x6000, scoped, tag = 'output window, operand 0']
    #allocation4 [shape = 's32[2]{0}', space=sflag, size = 0x8, scoped, tag = 'scoped memory for tpu_custom_call.1']
    #allocation5 [shape = 'u8[98304]{0}', space=vmem, size = 0x18000, scoped, tag = 'output window, operand 1']
    #allocation6 [shape = 's32[2]{0}', space=sflag, size = 0x8, scoped, tag = 'scoped memory for tpu_custom_call.1']
    %8 = vsyncpa [#allocation4], 0
    %s9 = scalar_lea.sflag [#allocation4], 1
    %10 = vsyncpa %s9, 0
    %11 = vsyncpa [#allocation6], 0
    %s12 = scalar_lea.sflag [#allocation6], 1
    %13 = vsyncpa %s12, 0
    loop: start=0, step=1, limit=6
    $region2: #{tpu_custom_call.1} parent=1 // loop_pre_header
      _
    $region3: #{tpu_custom_call.1} parent=1 // loop_header
      %s15 = sphi 0, %s19
      %p16 = scmp.ge.s32.totalorder %s15, 6
      %s22 = sphi 0, %s34
      %s23 = sphi 0, %s30
      %s24 = sphi 0, %s22
      %s25 = sphi 0, %s23
      %s26 = sphi 0, %s24
      %s27 = sphi 0, %s25
      %s39 = sphi 0, %s41
      %s42 = sphi 0, %s39
      %s43 = sphi 0, %s42
      %s59 = sphi 0, %s43
      %s67 = sphi 0, %s69
      %s70 = sphi 0, %s67
      %s71 = sphi 0, %s70
      %s87 = sphi 0, %s71
      %s95 = sphi 0, %s97
      %s98 = sphi 0, %s95
      %s99 = sphi 0, %s98
      %s115 = sphi 0, %s99
    $region4: #{tpu_custom_call.1} parent=1 // loop_header_branch
      %18 = sbr.rel (%p16) target = $region8
    $region5: #{tpu_custom_call.1} parent=1 // loop_body
      %s20 = ssub.s32 %s15, 1
      %s21 = ssub.s32 %s15, 2
      %s28 = sadd.s32 1, %s23
      %p29 = scmp.ge.s32.totalorder %s28, 2
      %s30 = scalar_select %p29, 0, %s28
      %s31 = sadd.s32 1, %s22
      %s32 = scalar_select %p29, %s31, %s22
      %p33 = scmp.ge.s32.totalorder %s32, 2
      %s34 = scalar_select %p33, 0, %s32
      %s35 = ssub.s32 %s22, %s34
      %s36 = ssub.s32 %s23, %s30
      %s37 = sor.u32 %s35, %s36
      %p38 = scmp.eq.s32.totalorder %s37, 0
      %s40 = sadd.s32 %s39, 1
      %s41 = scalar_select %p38, %s39, %s40
      %p44 = pneg %p38
      %p45 = scmp.eq.s32.totalorder %s15, 3
      %p46 = por %p44, %p45
      %p47 = scmp.ne.s32.totalorder %s39, %s42
      %p48 = scmp.eq.s32.totalorder %s15, 0
      %p49 = por %p47, %p48
      %p50 = scmp.ne.s32.totalorder %s39, %s42
      %p51 = scmp.eq.s32.totalorder %s20, 3
      %p52 = por %p50, %p51
      %p53 = scmp.ne.s32.totalorder %s42, %s43
      %p54 = scmp.eq.s32.totalorder %s20, 0
      %p55 = por %p53, %p54
      %p56 = scmp.ne.s32.totalorder %s42, %s43
      %p57 = scmp.eq.s32.totalorder %s21, 3
      %p58 = por %p56, %p57
      %p60 = scmp.ne.s32.totalorder %s43, %s59
      %p61 = scmp.eq.s32.totalorder %s21, 0
      %p62 = por %p60, %p61
      %s63 = ssub.s32 %s22, %s34
      %s64 = ssub.s32 %s23, %s30
      %s65 = sor.u32 %s63, %s64
      %p66 = scmp.eq.s32.totalorder %s65, 0
      %s68 = sadd.s32 %s67, 1
      %s69 = scalar_select %p66, %s67, %s68
      %p72 = pneg %p66
      %p73 = scmp.eq.s32.totalorder %s15, 3
      %p74 = por %p72, %p73
      %p75 = scmp.ne.s32.totalorder %s67, %s70
      %p76 = scmp.eq.s32.totalorder %s15, 0
      %p77 = por %p75, %p76
      %p78 = scmp.ne.s32.totalorder %s67, %s70
      %p79 = scmp.eq.s32.totalorder %s20, 3
      %p80 = por %p78, %p79
      %p81 = scmp.ne.s32.totalorder %s70, %s71
      %p82 = scmp.eq.s32.totalorder %s20, 0
      %p83 = por %p81, %p82
      %p84 = scmp.ne.s32.totalorder %s70, %s71
      %p85 = scmp.eq.s32.totalorder %s21, 3
      %p86 = por %p84, %p85
      %p88 = scmp.ne.s32.totalorder %s71, %s87
      %p89 = scmp.eq.s32.totalorder %s21, 0
      %p90 = por %p88, %p89
      %s91 = ssub.s32 %s22, %s34
      %s92 = ssub.s32 %s23, %s30
      %s93 = sor.u32 %s91, %s92
      %p94 = scmp.eq.s32.totalorder %s93, 0
      %s96 = sadd.s32 %s95, 1
      %s97 = scalar_select %p94, %s95, %s96
      %p100 = pneg %p94
      %p101 = scmp.eq.s32.totalorder %s15, 3
      %p102 = por %p100, %p101
      %p103 = scmp.ne.s32.totalorder %s95, %s98
      %p104 = scmp.eq.s32.totalorder %s15, 0
      %p105 = por %p103, %p104
      %p106 = scmp.ne.s32.totalorder %s95, %s98
      %p107 = scmp.eq.s32.totalorder %s20, 3
      %p108 = por %p106, %p107
      %p109 = scmp.ne.s32.totalorder %s98, %s99
      %p110 = scmp.eq.s32.totalorder %s20, 0
      %p111 = por %p109, %p110
      %p112 = scmp.ne.s32.totalorder %s98, %s99
      %p113 = scmp.eq.s32.totalorder %s21, 3
      %p114 = por %p112, %p113
      %p116 = scmp.ne.s32.totalorder %s99, %s115
      %p117 = scmp.eq.s32.totalorder %s21, 0
      %p118 = por %p116, %p117
      %p119 = scmp.le.s32.totalorder 1, %s15
      %p120 = scmp.lt.s32.totalorder %s15, 5
      %p121 = pnand %p119, %p120
      %p122 = pneg %p121
      // Predicated region
      $region9: #{tpu_custom_call.1} parent=5 // pred_check
        _
      $region10: #{tpu_custom_call.1} parent=5 // pred_check_branch
        %124 = sbr.rel (%p121) target = $region12
      $region11: #{tpu_custom_call.1} parent=5 // pred_region
        %s125 = ssub.s32 %s15, 1
      $region12: #{tpu_custom_call.1} parent=5 // pred_fallthru
        _
      %p126 = scmp.lt.s32.totalorder %s15, 4
      // Predicated region
      $region13: #{tpu_custom_call.1} parent=5 // pred_check
        %p127 = pneg %p126
      $region14: #{tpu_custom_call.1} parent=5 // pred_check_branch
        %129 = sbr.rel (%p127) target = $region16
      $region15: #{tpu_custom_call.1} parent=5 // pred_region
        // Predicated region
        $region17: #{tpu_custom_call.1} parent=15 // pred_check
          %p130 = pneg %p49
        $region18: #{tpu_custom_call.1} parent=15 // pred_check_branch
          %132 = sbr.rel (%p130) target = $region20
        $region19: #{tpu_custom_call.1} parent=15 // pred_region
          %s133 = sand.u32 %s39, 1
          %s134 = sand.u32 %s39, 1
          %s135 = smul.addr %s134, 144
          %s136 = scalar_lea.vmem [#allocation2], %s135
          %s137 = smul.u32 6, %s23
          %s138 = smul.addr %s22, 36
          %s139 = sadd.s32 %s137, %s138
          %s140 = smul.addr %s139, 8
          %s141 = scalar_lea.vmem %s0, %s140
          // Predicated region
          $region21: #{tpu_custom_call.1} parent=19 // pred_check
            _
          $region22: #{tpu_custom_call.1} parent=19 // pred_check_branch
            %143 = sbr.rel (0) target = $region24
          $region23: #{tpu_custom_call.1} parent=19 // pred_region
            // Predicated region
            $region25: #{tpu_custom_call.1} parent=23 // pred_check
              _
            $region26: #{tpu_custom_call.1} parent=23 // pred_check_branch
              %145 = sbr.rel (0) target = $region28
            $region27: #{tpu_custom_call.1} parent=23 // pred_region
              loop: start=0, step=1, limit=1
              $region29: #{tpu_custom_call.1} parent=27 // loop_pre_header
                _
              $region30: #{tpu_custom_call.1} parent=27 // loop_header
                %s147 = sphi 0, %s151
                %p148 = scmp.ge.s32.totalorder %s147, 1
                %s152 = sphi %s141, %s141
                %s153 = sphi %s136, %s136
              $region31: #{tpu_custom_call.1} parent=27 // loop_header_branch
                %150 = sbr.rel (%p148) target = $region35
              $region32: #{tpu_custom_call.1} parent=27 // loop_body
                %v154 = vld [vmem:[%s152] sm:$0xff]
                %155 = vst [vmem:[%s153] sm:$0xff] %v154
                %v156 = vld [vmem:[%s152 + $0x8] sm:$0xff]
                %157 = vst [vmem:[%s153 + $0x8] sm:$0xff] %v156
                %v158 = vld [vmem:[%s152 + $0x10] sm:$0xff]
                %159 = vst [vmem:[%s153 + $0x10] sm:$0xff] %v158
                %v160 = vld [vmem:[%s152 + $0x18] sm:$0xff]
                %161 = vst [vmem:[%s153 + $0x18] sm:$0xff] %v160
                %v162 = vld [vmem:[%s152 + $0x20] sm:$0xff]
                %163 = vst [vmem:[%s153 + $0x20] sm:$0xff] %v162
                %v164 = vld [vmem:[%s152 + $0x28] sm:$0xff]
                %165 = vst [vmem:[%s153 + $0x28] sm:$0xff] %v164
                %v166 = vld [vmem:[%s152 + $0x60] sm:$0xff]
                %167 = vst [vmem:[%s153 + $0x30] sm:$0xff] %v166
                %v168 = vld [vmem:[%s152 + $0x68] sm:$0xff]
                %169 = vst [vmem:[%s153 + $0x38] sm:$0xff] %v168
                %v170 = vld [vmem:[%s152 + $0x70] sm:$0xff]
                %171 = vst [vmem:[%s153 + $0x40] sm:$0xff] %v170
                %v172 = vld [vmem:[%s152 + $0x78] sm:$0xff]
                %173 = vst [vmem:[%s153 + $0x48] sm:$0xff] %v172
                %v174 = vld [vmem:[%s152 + $0x80] sm:$0xff]
                %175 = vst [vmem:[%s153 + $0x50] sm:$0xff] %v174
                %v176 = vld [vmem:[%s152 + $0x88] sm:$0xff]
                %177 = vst [vmem:[%s153 + $0x58] sm:$0xff] %v176
                %v178 = vld [vmem:[%s152 + $0xc0] sm:$0xff]
                %179 = vst [vmem:[%s153 + $0x60] sm:$0xff] %v178
                %v180 = vld [vmem:[%s152 + $0xc8] sm:$0xff]
                %181 = vst [vmem:[%s153 + $0x68] sm:$0xff] %v180
                %v182 = vld [vmem:[%s152 + $0xd0] sm:$0xff]
                %183 = vst [vmem:[%s153 + $0x70] sm:$0xff] %v182
                %v184 = vld [vmem:[%s152 + $0xd8] sm:$0xff]
                %185 = vst [vmem:[%s153 + $0x78] sm:$0xff] %v184
                %v186 = vld [vmem:[%s152 + $0xe0] sm:$0xff]
                %187 = vst [vmem:[%s153 + $0x80] sm:$0xff] %v186
                %v188 = vld [vmem:[%s152 + $0xe8] sm:$0xff]
                %189 = vst [vmem:[%s153 + $0x88] sm:$0xff] %v188
              $region33: #{tpu_custom_call.1} parent=27 // loop_footer
                %s151 = sadd.s32 1, %s147
              $region34: #{tpu_custom_call.1} parent=27 // loop_footer_branch
                %146 = sbr.rel target = $region30
              $region35: #{tpu_custom_call.1} parent=27 // loop_exit
                _
            $region28: #{tpu_custom_call.1} parent=23 // pred_fallthru
              _
            // Predicated region
            $region36: #{tpu_custom_call.1} parent=23 // pred_check
              _
            $region37: #{tpu_custom_call.1} parent=23 // pred_check_branch
              %191 = sbr.rel target = $region39
            $region38: #{tpu_custom_call.1} parent=23 // pred_region
              _
            $region39: #{tpu_custom_call.1} parent=23 // pred_fallthru
              _
          $region24: #{tpu_custom_call.1} parent=19 // pred_fallthru
            _
          %192 = vnop
        $region20: #{tpu_custom_call.1} parent=15 // pred_fallthru
          _
      $region16: #{tpu_custom_call.1} parent=5 // pred_fallthru
        _
      %p193 = scmp.le.s32.totalorder 1, %s15
      %p194 = scmp.lt.s32.totalorder %s15, 5
      %p195 = pnand %p193, %p194
      %p196 = pneg %p195
      // Predicated region
      $region40: #{tpu_custom_call.1} parent=5 // pred_check
        _
      $region41: #{tpu_custom_call.1} parent=5 // pred_check_branch
        %198 = sbr.rel (%p195) target = $region43
      $region42: #{tpu_custom_call.1} parent=5 // pred_region
        %s199 = ssub.s32 %s15, 1
        %s200 = sand.u32 %s42, 1
        %s201 = sand.u32 %s42, 1
        %s202 = smul.addr %s201, 144
        %s203 = scalar_lea.vmem [#allocation2], %s202
        // Predicated region
        $region44: #{tpu_custom_call.1} parent=42 // pred_check
          %p204 = pneg %p55
        $region45: #{tpu_custom_call.1} parent=42 // pred_check_branch
          %206 = sbr.rel (%p204) target = $region47
        $region46: #{tpu_custom_call.1} parent=42 // pred_region
          _
        $region47: #{tpu_custom_call.1} parent=42 // pred_fallthru
          _
        %s207 = sand.u32 %s42, 1
        %s208 = sand.u32 %s42, 1
        %s209 = smul.addr %s208, 144
        %s210 = scalar_lea.vmem [#allocation2], %s209
        %p211 = pneg %p55
        %p212 = pneg %p52
        %p213 = pneg %p83
        %p214 = pneg %p80
        %s215 = sand.u32 %s70, 1
        %s216 = scalar_lea.sflag [#allocation4], %s215
        %s217 = sand.u32 %s70, 1
        %s218 = smul.addr %s217, 24
        %s219 = scalar_lea.vmem [#allocation3], %s218
        %p220 = pneg %p111
        %p221 = pneg %p108
        %s222 = sand.u32 %s98, 1
        %s223 = scalar_lea.sflag [#allocation6], %s222
        %s224 = sand.u32 %s98, 1
        %s225 = smul.addr %s224, 96
        %s226 = scalar_lea.vmem [#allocation5], %s225
        %s227 = smul.u32 6, %s25
        %s228 = smul.u32 6, %s25
        %s229 = smul.u32 6, %s25
        %v230 = vld [vmem:[%s203] sm:$0xff]
        %v231 = vld [vmem:[%s203 + $0x8] sm:$0xff]
        %v232 = vld [vmem:[%s203 + $0x10] sm:$0xff]
        %v233 = vld [vmem:[%s203 + $0x18] sm:$0xff]
        %v234 = vld [vmem:[%s203 + $0x20] sm:$0xff]
        %v235 = vld [vmem:[%s203 + $0x28] sm:$0xff]
        %v236 = vld [vmem:[%s203 + $0x30] sm:$0xff]
        %v237 = vld [vmem:[%s203 + $0x38] sm:$0xff]
        %v238 = vld [vmem:[%s203 + $0x40] sm:$0xff]
        %v239 = vld [vmem:[%s203 + $0x48] sm:$0xff]
        %v240 = vld [vmem:[%s203 + $0x50] sm:$0xff]
        %v241 = vld [vmem:[%s203 + $0x58] sm:$0xff]
        %v242 = vld [vmem:[%s203 + $0x60] sm:$0xf]
        %v243 = vld [vmem:[%s203 + $0x68] sm:$0xf]
        %v244 = vld [vmem:[%s203 + $0x70] sm:$0xf]
        %v245 = vld [vmem:[%s203 + $0x78] sm:$0xf]
        %v246 = vld [vmem:[%s203 + $0x80] sm:$0xf]
        %v247 = vld [vmem:[%s203 + $0x88] sm:$0xf]
        %v254 = vrot.slane %v231, 4
        %v255 = vrot.slane %v233, 4
        %v256 = vrot.slane %v235, 4
        %vm257 = vcmask 1043456
        %v258 = vsel %vm257, %v230, %v254
        %v259 = vsel %vm257, %v232, %v255
        %v260 = vsel %vm257, %v234, %v256
        %264 = vst [vmem:[%s219] sm:$0xff] %v258
        %265 = vst [vmem:[%s219 + $0x8] sm:$0xff] %v259
        %266 = vst [vmem:[%s219 + $0x10] sm:$0xff] %v260
        %v279 = vrot.slane %v230, 4
        %v280 = vrot.slane %v236, 4
        %v281 = vsel %vm257, %v279, %v280
        %v282 = vrot.slane %v237, 4
        %v283 = vsel %vm257, %v254, %v282
        %v284 = vrot.slane %v232, 4
        %v285 = vrot.slane %v238, 4
        %v286 = vsel %vm257, %v284, %v285
        %v287 = vrot.slane %v239, 4
        %v288 = vsel %vm257, %v255, %v287
        %v289 = vrot.slane %v234, 4
        %v290 = vrot.slane %v240, 4
        %v291 = vsel %vm257, %v289, %v290
        %v292 = vrot.slane %v241, 4
        %v293 = vsel %vm257, %v256, %v292
        %v294 = vrot.slane %v242, 4
        %v295 = vsel %vm257, %v280, %v294
        %v296 = vrot.slane %v243, 4
        %v297 = vsel %vm257, %v282, %v296
        %v298 = vrot.slane %v244, 4
        %v299 = vsel %vm257, %v285, %v298
        %v300 = vrot.slane %v245, 4
        %v301 = vsel %vm257, %v287, %v300
        %v302 = vrot.slane %v246, 4
        %v303 = vsel %vm257, %v290, %v302
        %v304 = vrot.slane %v247, 4
        %v305 = vsel %vm257, %v292, %v304
        %318 = vst [vmem:[%s226] sm:$0xff] %v281
        %319 = vst [vmem:[%s226 + $0x8] sm:$0xff] %v283
        %320 = vst [vmem:[%s226 + $0x10] sm:$0xff] %v286
        %321 = vst [vmem:[%s226 + $0x18] sm:$0xff] %v288
        %322 = vst [vmem:[%s226 + $0x20] sm:$0xff] %v291
        %323 = vst [vmem:[%s226 + $0x28] sm:$0xff] %v293
        %324 = vst [vmem:[%s226 + $0x30] sm:$0xff] %v295
        %325 = vst [vmem:[%s226 + $0x38] sm:$0xff] %v297
        %326 = vst [vmem:[%s226 + $0x40] sm:$0xff] %v299
        %327 = vst [vmem:[%s226 + $0x48] sm:$0xff] %v301
        %328 = vst [vmem:[%s226 + $0x50] sm:$0xff] %v303
        %329 = vst [vmem:[%s226 + $0x58] sm:$0xff] %v305
        %s330 = sand.u32 %s70, 1
        %s331 = scalar_lea.sflag [#allocation4], %s330
        %s332 = sand.u32 %s70, 1
        %s333 = smul.addr %s332, 24
        %s334 = scalar_lea.vmem [#allocation3], %s333
        %s335 = sand.u32 %s98, 1
        %s336 = scalar_lea.sflag [#allocation6], %s335
        %s337 = sand.u32 %s98, 1
        %s338 = smul.addr %s337, 96
        %s339 = scalar_lea.vmem [#allocation5], %s338
        // Predicated region
        $region48: #{tpu_custom_call.1} parent=42 // pred_check
          %p340 = pneg %p80
        $region49: #{tpu_custom_call.1} parent=42 // pred_check_branch
          %342 = sbr.rel (%p340) target = $region51
        $region50: #{tpu_custom_call.1} parent=42 // pred_region
          %s343 = smul.u32 6, %s25
          %345 = vsyncadd %s331, 0
          %s346 = smul.addr %s24, 12
          %s347 = sadd.s32 %s343, %s346
          %s348 = smul.addr %s347, 4
          %s349 = scalar_lea.hbm %s1, %s348
          %s351 = sshll.u32 %s334, 4
          %s352 = int_to_ptr.vmem [resolvable:$true] %s351
          %s353 = sshll.u32 %s349, 4
          %s354 = int_to_ptr.hbm [resolvable:$true] %s353
          %356 = dma.vmem_to_hbm [thread:$0]  %s352, 384, %s354, %s331
        $region51: #{tpu_custom_call.1} parent=42 // pred_fallthru
          _
        // Predicated region
        $region52: #{tpu_custom_call.1} parent=42 // pred_check
          %p357 = pneg %p108
        $region53: #{tpu_custom_call.1} parent=42 // pred_check_branch
          %359 = sbr.rel (%p357) target = $region55
        $region54: #{tpu_custom_call.1} parent=42 // pred_region
          %s360 = smul.u32 6, %s25
          %362 = vsyncadd %s336, 0
          %s363 = smul.addr %s24, 24
          %s364 = sadd.s32 %s360, %s363
          %s365 = smul.addr %s364, 8
          %s366 = scalar_lea.hbm %s2, %s365
          %s367 = sshll.u32 %s339, 4
          %s368 = int_to_ptr.vmem [resolvable:$true] %s367
          %s369 = sshll.u32 %s366, 4
          %s370 = int_to_ptr.hbm [resolvable:$true] %s369
          %375 = dma.vmem_to_hbm [thread:$0]  %s368, 1536, %s370, %s336, 768, 1536, 48
        $region55: #{tpu_custom_call.1} parent=42 // pred_fallthru
          _
      $region43: #{tpu_custom_call.1} parent=5 // pred_fallthru
        _
      %p376 = scmp.le.s32.totalorder 2, %s15
      // Predicated region
      $region56: #{tpu_custom_call.1} parent=5 // pred_check
        %p377 = pneg %p376
      $region57: #{tpu_custom_call.1} parent=5 // pred_check_branch
        %379 = sbr.rel (%p377) target = $region59
      $region58: #{tpu_custom_call.1} parent=5 // pred_region
        %s380 = ssub.s32 %s15, 2
        // Predicated region
        $region60: #{tpu_custom_call.1} parent=58 // pred_check
          %p381 = pneg %p86
        $region61: #{tpu_custom_call.1} parent=58 // pred_check_branch
          %383 = sbr.rel (%p381) target = $region63
        $region62: #{tpu_custom_call.1} parent=58 // pred_region
          %s384 = sand.u32 %s71, 1
          %s385 = scalar_lea.sflag [#allocation4], %s384
          %s386 = sand.u32 %s71, 1
          %s387 = smul.addr %s386, 24
          %s388 = scalar_lea.vmem [#allocation3], %s387
          %390 = dma.done %s385, 384
        $region63: #{tpu_custom_call.1} parent=58 // pred_fallthru
          _
        // Predicated region
        $region64: #{tpu_custom_call.1} parent=58 // pred_check
          %p391 = pneg %p114
        $region65: #{tpu_custom_call.1} parent=58 // pred_check_branch
          %393 = sbr.rel (%p391) target = $region67
        $region66: #{tpu_custom_call.1} parent=58 // pred_region
          %s394 = sand.u32 %s99, 1
          %s395 = scalar_lea.sflag [#allocation6], %s394
          %s396 = sand.u32 %s99, 1
          %s397 = smul.addr %s396, 96
          %s398 = scalar_lea.vmem [#allocation5], %s397
          %400 = dma.done %s395, 1536
        $region67: #{tpu_custom_call.1} parent=58 // pred_fallthru
          _
      $region59: #{tpu_custom_call.1} parent=5 // pred_fallthru
        _
    $region6: #{tpu_custom_call.1} parent=1 // loop_footer
      %s19 = sadd.s32 1, %s15
    $region7: #{tpu_custom_call.1} parent=1 // loop_footer_branch
      %14 = sbr.rel target = $region3
    $region8: #{tpu_custom_call.1} parent=1 // loop_exit
      _
    %401 = vsyncpa [#allocation4], 1
    %s402 = scalar_lea.sflag [#allocation4], 1
    %403 = vsyncpa %s402, 1
    %404 = vsyncpa [#allocation6], 1
    %s405 = scalar_lea.sflag [#allocation6], 1
    %406 = vsyncpa %s405, 1

</llo_original>
